<compile_context>
chip_gen: v7x
topology: tpu7x:2x2x1
jax: 0.10.0
libtpu: 0.0.40
codegen_flags: <defaults>
</compile_context>

<pallas_src>
import jax
import jax.numpy as jnp
from jax.experimental import pallas as pl
from jax.experimental.pallas import tpu as pltpu


# ------------------------------ Pallas kernel ------------------------------


def _gblock_kernel(x1_ref, x2_ref, x3_ref, w1_ref, w2_ref, b_ref, out_ref):
    # x1_ref/x2_ref: (in_c, T), x3_ref: (out_c, T), w*: (out_c, in_c), b: (out_c, 1)
    h = (
        jnp.dot(w1_ref[...], x1_ref[...], preferred_element_type=jnp.float32)
        + jnp.dot(w2_ref[...], x2_ref[...], preferred_element_type=jnp.float32)
        + b_ref[...]
    )
    out_ref[...] = (jax.nn.sigmoid(h) * x3_ref[...]).astype(out_ref.dtype)


# ------------------------------ tiling ------------------------------


def _pick_spatial_tile(hw, in_c, out_c, budget_bytes=8 << 20):
    """Largest multiple-of-128 spatial tile dividing HW within a per-step VMEM budget."""
    if hw % 128 != 0:
        return hw  # full-extent block (always legal)
    # f32 bytes per spatial column across all streamed tiles (x1, x2, x3, out),
    # times 2 for double-buffering.
    per_col = 4 * (2 * in_c + 2 * out_c) * 2
    t = max(128, (budget_bytes // per_col) // 128 * 128)
    t = min(t, hw)
    while hw % t != 0:
        t -= 128
    return t


# ------------------------------ wrapper ------------------------------


@jax.jit
def gblock_forward(params, x1, x2, x3):
    """x1, x2: (N, in_c, H, W); x3: (N, out_c, H, W). Returns (N, out_c, H, W)."""
    n, in_c, h, w = x1.shape
    out_c = params["w"].shape[0]
    hw = h * w

    # NCHW -> (N, C, HW): pure reshape, no transpose, keeps spatial as the lane axis.
    x1f = x1.reshape(n, in_c, hw)
    x2f = x2.reshape(n, in_c, hw)
    x3f = x3.reshape(n, out_c, hw)

    w_full = params["w"][:, :, 0, 0]          # (out_c, 2*in_c)
    w1 = w_full[:, :in_c]                     # acts on x1
    w2 = w_full[:, in_c:]                     # acts on x2
    b = params["b"].reshape(out_c, 1)

    thw = _pick_spatial_tile(hw, in_c, out_c)
    grid = (n, hw // thw)

    flops = 2 * n * hw * (2 * in_c) * out_c + 3 * n * hw * out_c
    bytes_accessed = 4 * (n * hw * (2 * in_c + 2 * out_c) + out_c * (2 * in_c + 1))

    out = pl.pallas_call(
        _gblock_kernel,
        out_shape=jax.ShapeDtypeStruct((n, out_c, hw), jnp.float32),
        grid=grid,
        in_specs=[
            pl.BlockSpec((None, in_c, thw), lambda i, j: (i, 0, j)),   # x1 tile
            pl.BlockSpec((None, in_c, thw), lambda i, j: (i, 0, j)),   # x2 tile
            pl.BlockSpec((None, out_c, thw), lambda i, j: (i, 0, j)),  # x3 tile
            pl.BlockSpec((out_c, in_c), lambda i, j: (0, 0)),          # w1 (resident)
            pl.BlockSpec((out_c, in_c), lambda i, j: (0, 0)),          # w2 (resident)
            pl.BlockSpec((out_c, 1), lambda i, j: (0, 0)),             # bias (resident)
        ],
        out_specs=pl.BlockSpec((None, out_c, thw), lambda i, j: (i, 0, j)),
        compiler_params=pltpu.CompilerParams(
            dimension_semantics=("parallel", "parallel"),
            vmem_limit_bytes=32 * 1024 * 1024,
        ),
        cost_estimate=pl.CostEstimate(
            flops=flops,
            transcendentals=n * hw * out_c,
            bytes_accessed=bytes_accessed,
        ),
    )(x1f, x2f, x3f, w1, w2, b)

    return out.reshape(n, out_c, h, w)


# ------------------------------ deterministic parameter init ------------------------------


def init_params(key, in_c, out_c):
    kw, kb = jax.random.split(key, 2)
    fan_in = 2 * in_c  # Conv2d(in_c + in_c, out_c, 1)
    bound = 1.0 / jnp.sqrt(jnp.float32(fan_in))
    return dict(
        w=jax.random.uniform(kw, (out_c, 2 * in_c, 1, 1), jnp.float32, -bound, bound),
        b=jax.random.uniform(kb, (out_c,), jnp.float32, -bound, bound),
    )


# ------------------------------ demo / self-check ------------------------------


if __name__ == "__main__":
    key = jax.random.PRNGKey(0)
    kp, k1, k2, k3 = jax.random.split(key, 4)

    N, IN_C, OUT_C, H, W = 2, 4, 8, 16, 16
    params = init_params(kp, IN_C, OUT_C)
    x1 = jax.random.normal(k1, (N, IN_C, H, W), jnp.float32)
    x2 = jax.random.normal(k2, (N, IN_C, H, W), jnp.float32)
    x3 = jax.random.normal(k3, (N, OUT_C, H, W), jnp.float32)

    out = gblock_forward(params, x1, x2, x3)
    jax.block_until_ready(out)

    assert out.shape == (N, OUT_C, H, W), out.shape
    assert bool(jnp.all(jnp.isfinite(out)))

    # Pure-JAX reference of the PyTorch forward: cat -> 1x1 conv -> sigmoid -> gate.
    xcat = jnp.concatenate([x1, x2], axis=1)
    wf = params["w"][:, :, 0, 0]
    ref = jnp.einsum("oc,nchw->nohw", wf, xcat) + params["b"][None, :, None, None]
    ref = jax.nn.sigmoid(ref) * x3
    assert bool(jnp.allclose(out, ref, atol=1e-5, rtol=1e-5))

    print("KERNEL_OK")
</pallas_src>

<mosaic_0001>
module attributes {stable_mosaic.version = 11 : i64} {
  func.func @_gblock_kernel(%arg0: i32, %arg1: i32, %arg2: memref<1x4x256xf32, #tpu.memory_space<vmem>>, %arg3: memref<1x4x256xf32, #tpu.memory_space<vmem>>, %arg4: memref<1x8x256xf32, #tpu.memory_space<vmem>>, %arg5: memref<8x4xf32, #tpu.memory_space<vmem>>, %arg6: memref<8x4xf32, #tpu.memory_space<vmem>>, %arg7: memref<8x1xf32, #tpu.memory_space<vmem>>, %arg8: memref<1x8x256xf32, #tpu.memory_space<vmem>>) attributes {dimension_semantics = [#tpu.dimension_semantics<parallel>, #tpu.dimension_semantics<parallel>], iteration_bounds = array<i64: 2, 1>, scalar_prefetch = 0 : i64, scratch_operands = 0 : i64, tpu.core_type = #tpu.core_type<tc>, window_params = [{transform_indices = @transform_0, window_bounds = array<i64: 1, 4, 256>}, {transform_indices = @transform_1, window_bounds = array<i64: 1, 4, 256>}, {transform_indices = @transform_2, window_bounds = array<i64: 1, 8, 256>}, {pipeline_mode = #tpu.pipeline_mode<synchronous>, transform_indices = @transform_3, window_bounds = array<i64: 8, 4>}, {pipeline_mode = #tpu.pipeline_mode<synchronous>, transform_indices = @transform_4, window_bounds = array<i64: 8, 4>}, {pipeline_mode = #tpu.pipeline_mode<synchronous>, transform_indices = @transform_5, window_bounds = array<i64: 8, 1>}, {transform_indices = @transform_6, window_bounds = array<i64: 1, 8, 256>}]} {
    %c0 = arith.constant 0 : index
    %c0_0 = arith.constant 0 : index
    %0 = vector.load %arg5[%c0, %c0_0] : memref<8x4xf32, #tpu.memory_space<vmem>>, vector<8x4xf32>
    %c0_1 = arith.constant 0 : index
    %c0_2 = arith.constant 0 : index
    %c0_3 = arith.constant 0 : index
    %1 = vector.load %arg2[%c0_1, %c0_2, %c0_3] : memref<1x4x256xf32, #tpu.memory_space<vmem>>, vector<1x4x256xf32>
    %2 = vector.shape_cast %1 : vector<1x4x256xf32> to vector<4x256xf32>
    %cst = arith.constant dense<0.000000e+00> : vector<8x256xf32>
    %3 = tpu.matmul %0, %2, %cst {dimension_numbers = #tpu.dot_dimension_numbers<[1], [0], [0], [1], [0, 0, 1, 1], [], []>} : vector<8x4xf32>, vector<4x256xf32>, vector<8x256xf32> -> vector<8x256xf32>
    %c0_4 = arith.constant 0 : index
    %c0_5 = arith.constant 0 : index
    %4 = vector.load %arg6[%c0_4, %c0_5] : memref<8x4xf32, #tpu.memory_space<vmem>>, vector<8x4xf32>
    %c0_6 = arith.constant 0 : index
    %c0_7 = arith.constant 0 : index
    %c0_8 = arith.constant 0 : index
    %5 = vector.load %arg3[%c0_6, %c0_7, %c0_8] : memref<1x4x256xf32, #tpu.memory_space<vmem>>, vector<1x4x256xf32>
    %6 = vector.shape_cast %5 : vector<1x4x256xf32> to vector<4x256xf32>
    %cst_9 = arith.constant dense<0.000000e+00> : vector<8x256xf32>
    %7 = tpu.matmul %4, %6, %cst_9 {dimension_numbers = #tpu.dot_dimension_numbers<[1], [0], [0], [1], [0, 0, 1, 1], [], []>} : vector<8x4xf32>, vector<4x256xf32>, vector<8x256xf32> -> vector<8x256xf32>
    %8 = arith.addf %3, %7 : vector<8x256xf32>
    %c0_10 = arith.constant 0 : index
    %c0_11 = arith.constant 0 : index
    %9 = vector.load %arg7[%c0_10, %c0_11] : memref<8x1xf32, #tpu.memory_space<vmem>>, vector<8x1xf32>
    %10 = vector.broadcast %9 : vector<8x1xf32> to vector<8x256xf32>
    %11 = arith.addf %8, %10 : vector<8x256xf32>
    %12 = arith.negf %11 : vector<8x256xf32>
    %13 = math.exp %12 : vector<8x256xf32>
    %cst_12 = arith.constant 1.000000e+00 : f32
    %14 = vector.broadcast %cst_12 : f32 to vector<8x256xf32>
    %15 = arith.addf %14, %13 : vector<8x256xf32>
    %16 = arith.divf %14, %15 : vector<8x256xf32>
    %c0_13 = arith.constant 0 : index
    %c0_14 = arith.constant 0 : index
    %c0_15 = arith.constant 0 : index
    %17 = vector.load %arg4[%c0_13, %c0_14, %c0_15] : memref<1x8x256xf32, #tpu.memory_space<vmem>>, vector<1x8x256xf32>
    %18 = vector.shape_cast %17 : vector<1x8x256xf32> to vector<8x256xf32>
    %19 = arith.mulf %16, %18 : vector<8x256xf32>
    %c0_16 = arith.constant 0 : index
    %c0_17 = arith.constant 0 : index
    %c0_18 = arith.constant 0 : index
    %20 = vector.load %arg8[%c0_16, %c0_17, %c0_18] : memref<1x8x256xf32, #tpu.memory_space<vmem>>, vector<1x8x256xf32>
    %21 = vector.shape_cast %20 : vector<1x8x256xf32> to vector<8x256xf32>
    %22 = vector.shape_cast %19 : vector<8x256xf32> to vector<1x8x256xf32>
    tpu.vector_store %arg8[%c0_16, %c0_17, %c0_18], %22 {strides = array<i32>} : memref<1x8x256xf32, #tpu.memory_space<vmem>>, vector<1x8x256xf32>,
    return
  }
  func.func @transform_0(%arg0: i32, %arg1: i32) -> (i32, i32, i32) {
    %c0_i32 = arith.constant 0 : i32
    %c0_i32_0 = arith.constant 0 : i32
    return %arg0, %c0_i32, %arg1 : i32, i32, i32
  }
  func.func @transform_1(%arg0: i32, %arg1: i32) -> (i32, i32, i32) {
    %c0_i32 = arith.constant 0 : i32
    %c0_i32_0 = arith.constant 0 : i32
    return %arg0, %c0_i32, %arg1 : i32, i32, i32
  }
  func.func @transform_2(%arg0: i32, %arg1: i32) -> (i32, i32, i32) {
    %c0_i32 = arith.constant 0 : i32
    %c0_i32_0 = arith.constant 0 : i32
    return %arg0, %c0_i32, %arg1 : i32, i32, i32
  }
  func.func @transform_3(%arg0: i32, %arg1: i32) -> (i32, i32) {
    %c0_i32 = arith.constant 0 : i32
    %c0_i32_0 = arith.constant 0 : i32
    %c0_i32_1 = arith.constant 0 : i32
    return %c0_i32, %c0_i32_0 : i32, i32
  }
  func.func @transform_4(%arg0: i32, %arg1: i32) -> (i32, i32) {
    %c0_i32 = arith.constant 0 : i32
    %c0_i32_0 = arith.constant 0 : i32
    %c0_i32_1 = arith.constant 0 : i32
    return %c0_i32, %c0_i32_0 : i32, i32
  }
  func.func @transform_5(%arg0: i32, %arg1: i32) -> (i32, i32) {
    %c0_i32 = arith.constant 0 : i32
    %c0_i32_0 = arith.constant 0 : i32
    %c0_i32_1 = arith.constant 0 : i32
    return %c0_i32, %c0_i32_0 : i32, i32
  }
  func.func @transform_6(%arg0: i32, %arg1: i32) -> (i32, i32, i32) {
    %c0_i32 = arith.constant 0 : i32
    %c0_i32_0 = arith.constant 0 : i32
    return %arg0, %c0_i32, %arg1 : i32, i32, i32
  }
}

</mosaic_0001>

<llo_original>
// kernel: gblock_forward.1
$region0: #{gblock_forward.1}
  #allocation0 [shape = 'u32[]', space=smem, size = 0x4, offset = 0x4, fixed_abs, tag = 'smem constant byte address 0x4 - core index']
  #allocation1 [shape = 'u32[144,128]{1,0:T(1,128)}', space=vmem, size = 0x12000, scoped, tag = 'internal scratch']
  %s0 = inlined_call_operand.vmem [shape: f32[2,4,256], index: 0, kind: input, shape index: {}]
  %s1 = inlined_call_operand.vmem [shape: f32[2,4,256], index: 1, kind: input, shape index: {}]
  %s2 = inlined_call_operand.vmem [shape: f32[2,8,256], index: 2, kind: input, shape index: {}]
  %s3 = inlined_call_operand.vmem [shape: f32[8,4], index: 3, kind: input, shape index: {}]
  %s4 = inlined_call_operand.vmem [shape: f32[8,4], index: 4, kind: input, shape index: {}]
  %s5 = inlined_call_operand.vmem [shape: f32[8,1], index: 5, kind: input, shape index: {}]
  %s6 = inlined_call_operand.vmem [shape: f32[2,8,256], index: 6, kind: output, shape index: {}]
  %s7 = sld [smem:[#allocation0]]
  $region57: #{gblock_forward.1} parent=0
    _
  %s9 = ssub.s32 1, %s7
  %s10 = scalar_select 0, %s9, %s7
  loop: start=0, step=1, limit=4
  $region2: #{gblock_forward.1} parent=0 // loop_pre_header
    _
  $region3: #{gblock_forward.1} parent=0 // loop_header
    %s12 = sphi 0, %s16
    %p13 = scmp.ge.s32.totalorder %s12, 4
    %s19 = sphi 0, %s31
    %s20 = sphi 0, %s27
    %s21 = sphi 0, %s19
    %s22 = sphi 0, %s20
    %s23 = sphi 0, %s21
    %s24 = sphi 0, %s22
    %s36 = sphi 0, %s38
    %s39 = sphi 0, %s36
    %s40 = sphi 0, %s39
    %s56 = sphi 0, %s40
    %s64 = sphi 0, %s66
    %s67 = sphi 0, %s64
    %s68 = sphi 0, %s67
    %s84 = sphi 0, %s68
    %s92 = sphi 0, %s94
    %s95 = sphi 0, %s92
    %s96 = sphi 0, %s95
    %s112 = sphi 0, %s96
    %s116 = sphi 0, %s116
    %s118 = sphi 0, %s116
    %s119 = sphi 0, %s118
    %s133 = sphi 0, %s119
    %s137 = sphi 0, %s137
    %s139 = sphi 0, %s137
    %s140 = sphi 0, %s139
    %s154 = sphi 0, %s140
    %s158 = sphi 0, %s158
    %s160 = sphi 0, %s158
    %s161 = sphi 0, %s160
    %s175 = sphi 0, %s161
    %s183 = sphi 0, %s185
    %s186 = sphi 0, %s183
    %s187 = sphi 0, %s186
    %s203 = sphi 0, %s187
  $region4: #{gblock_forward.1} parent=0 // loop_header_branch
    %15 = sbr.rel (%p13) target = $region8
  $region5: #{gblock_forward.1} parent=0 // loop_body
    %s17 = ssub.s32 %s12, 1
    %s18 = ssub.s32 %s12, 2
    %s25 = sadd.s32 1, %s20
    %p26 = scmp.ge.s32.totalorder %s25, 1
    %s27 = scalar_select %p26, 0, %s25
    %s28 = sadd.s32 1, %s19
    %s29 = scalar_select %p26, %s28, %s19
    %p30 = scmp.ge.s32.totalorder %s29, 2
    %s31 = scalar_select %p30, 0, %s29
    %s32 = ssub.s32 %s19, %s31
    %s33 = ssub.s32 %s20, %s27
    %s34 = sor.u32 %s32, %s33
    %p35 = scmp.eq.s32.totalorder %s34, 0
    %s37 = sadd.s32 %s36, 1
    %s38 = scalar_select %p35, %s36, %s37
    %p41 = pneg %p35
    %p42 = scmp.eq.s32.totalorder %s12, 1
    %p43 = por %p41, %p42
    %p44 = scmp.ne.s32.totalorder %s36, %s39
    %p45 = scmp.eq.s32.totalorder %s12, 0
    %p46 = por %p44, %p45
    %p47 = scmp.ne.s32.totalorder %s36, %s39
    %p48 = scmp.eq.s32.totalorder %s17, 1
    %p49 = por %p47, %p48
    %p50 = scmp.ne.s32.totalorder %s39, %s40
    %p51 = scmp.eq.s32.totalorder %s17, 0
    %p52 = por %p50, %p51
    %p53 = scmp.ne.s32.totalorder %s39, %s40
    %p54 = scmp.eq.s32.totalorder %s18, 1
    %p55 = por %p53, %p54
    %p57 = scmp.ne.s32.totalorder %s40, %s56
    %p58 = scmp.eq.s32.totalorder %s18, 0
    %p59 = por %p57, %p58
    %s60 = ssub.s32 %s19, %s31
    %s61 = ssub.s32 %s20, %s27
    %s62 = sor.u32 %s60, %s61
    %p63 = scmp.eq.s32.totalorder %s62, 0
    %s65 = sadd.s32 %s64, 1
    %s66 = scalar_select %p63, %s64, %s65
    %p69 = pneg %p63
    %p70 = scmp.eq.s32.totalorder %s12, 1
    %p71 = por %p69, %p70
    %p72 = scmp.ne.s32.totalorder %s64, %s67
    %p73 = scmp.eq.s32.totalorder %s12, 0
    %p74 = por %p72, %p73
    %p75 = scmp.ne.s32.totalorder %s64, %s67
    %p76 = scmp.eq.s32.totalorder %s17, 1
    %p77 = por %p75, %p76
    %p78 = scmp.ne.s32.totalorder %s67, %s68
    %p79 = scmp.eq.s32.totalorder %s17, 0
    %p80 = por %p78, %p79
    %p81 = scmp.ne.s32.totalorder %s67, %s68
    %p82 = scmp.eq.s32.totalorder %s18, 1
    %p83 = por %p81, %p82
    %p85 = scmp.ne.s32.totalorder %s68, %s84
    %p86 = scmp.eq.s32.totalorder %s18, 0
    %p87 = por %p85, %p86
    %s88 = ssub.s32 %s19, %s31
    %s89 = ssub.s32 %s20, %s27
    %s90 = sor.u32 %s88, %s89
    %p91 = scmp.eq.s32.totalorder %s90, 0
    %s93 = sadd.s32 %s92, 1
    %s94 = scalar_select %p91, %s92, %s93
    %p97 = pneg %p91
    %p98 = scmp.eq.s32.totalorder %s12, 1
    %p99 = por %p97, %p98
    %p100 = scmp.ne.s32.totalorder %s92, %s95
    %p101 = scmp.eq.s32.totalorder %s12, 0
    %p102 = por %p100, %p101
    %p103 = scmp.ne.s32.totalorder %s92, %s95
    %p104 = scmp.eq.s32.totalorder %s17, 1
    %p105 = por %p103, %p104
    %p106 = scmp.ne.s32.totalorder %s95, %s96
    %p107 = scmp.eq.s32.totalorder %s17, 0
    %p108 = por %p106, %p107
    %p109 = scmp.ne.s32.totalorder %s95, %s96
    %p110 = scmp.eq.s32.totalorder %s18, 1
    %p111 = por %p109, %p110
    %p113 = scmp.ne.s32.totalorder %s96, %s112
    %p114 = scmp.eq.s32.totalorder %s18, 0
    %p115 = por %p113, %p114
    %s117 = sadd.s32 %s116, 1
    %p120 = scmp.eq.s32.totalorder %s12, 1
    %p121 = scmp.ne.s32.totalorder %s116, %s118
    %p122 = scmp.eq.s32.totalorder %s12, 0
    %p123 = por %p121, %p122
    %p124 = scmp.ne.s32.totalorder %s116, %s118
    %p125 = scmp.eq.s32.totalorder %s17, 1
    %p126 = por %p124, %p125
    %p127 = scmp.ne.s32.totalorder %s118, %s119
    %p128 = scmp.eq.s32.totalorder %s17, 0
    %p129 = por %p127, %p128
    %p130 = scmp.ne.s32.totalorder %s118, %s119
    %p131 = scmp.eq.s32.totalorder %s18, 1
    %p132 = por %p130, %p131
    %p134 = scmp.ne.s32.totalorder %s119, %s133
    %p135 = scmp.eq.s32.totalorder %s18, 0
    %p136 = por %p134, %p135
    %s138 = sadd.s32 %s137, 1
    %p141 = scmp.eq.s32.totalorder %s12, 1
    %p142 = scmp.ne.s32.totalorder %s137, %s139
    %p143 = scmp.eq.s32.totalorder %s12, 0
    %p144 = por %p142, %p143
    %p145 = scmp.ne.s32.totalorder %s137, %s139
    %p146 = scmp.eq.s32.totalorder %s17, 1
    %p147 = por %p145, %p146
    %p148 = scmp.ne.s32.totalorder %s139, %s140
    %p149 = scmp.eq.s32.totalorder %s17, 0
    %p150 = por %p148, %p149
    %p151 = scmp.ne.s32.totalorder %s139, %s140
    %p152 = scmp.eq.s32.totalorder %s18, 1
    %p153 = por %p151, %p152
    %p155 = scmp.ne.s32.totalorder %s140, %s154
    %p156 = scmp.eq.s32.totalorder %s18, 0
    %p157 = por %p155, %p156
    %s159 = sadd.s32 %s158, 1
    %p162 = scmp.eq.s32.totalorder %s12, 1
    %p163 = scmp.ne.s32.totalorder %s158, %s160
    %p164 = scmp.eq.s32.totalorder %s12, 0
    %p165 = por %p163, %p164
    %p166 = scmp.ne.s32.totalorder %s158, %s160
    %p167 = scmp.eq.s32.totalorder %s17, 1
    %p168 = por %p166, %p167
    %p169 = scmp.ne.s32.totalorder %s160, %s161
    %p170 = scmp.eq.s32.totalorder %s17, 0
    %p171 = por %p169, %p170
    %p172 = scmp.ne.s32.totalorder %s160, %s161
    %p173 = scmp.eq.s32.totalorder %s18, 1
    %p174 = por %p172, %p173
    %p176 = scmp.ne.s32.totalorder %s161, %s175
    %p177 = scmp.eq.s32.totalorder %s18, 0
    %p178 = por %p176, %p177
    %s179 = ssub.s32 %s19, %s31
    %s180 = ssub.s32 %s20, %s27
    %s181 = sor.u32 %s179, %s180
    %p182 = scmp.eq.s32.totalorder %s181, 0
    %s184 = sadd.s32 %s183, 1
    %s185 = scalar_select %p182, %s183, %s184
    %p188 = pneg %p182
    %p189 = scmp.eq.s32.totalorder %s12, 1
    %p190 = por %p188, %p189
    %p191 = scmp.ne.s32.totalorder %s183, %s186
    %p192 = scmp.eq.s32.totalorder %s12, 0
    %p193 = por %p191, %p192
    %p194 = scmp.ne.s32.totalorder %s183, %s186
    %p195 = scmp.eq.s32.totalorder %s17, 1
    %p196 = por %p194, %p195
    %p197 = scmp.ne.s32.totalorder %s186, %s187
    %p198 = scmp.eq.s32.totalorder %s17, 0
    %p199 = por %p197, %p198
    %p200 = scmp.ne.s32.totalorder %s186, %s187
    %p201 = scmp.eq.s32.totalorder %s18, 1
    %p202 = por %p200, %p201
    %p204 = scmp.ne.s32.totalorder %s187, %s203
    %p205 = scmp.eq.s32.totalorder %s18, 0
    %p206 = por %p204, %p205
    %p207 = scmp.le.s32.totalorder 1, %s12
    %p208 = scmp.lt.s32.totalorder %s12, 3
    %p209 = pnand %p207, %p208
    %p210 = pneg %p209
    // Predicated region
    $region9: #{gblock_forward.1} parent=5 // pred_check
      _
    $region10: #{gblock_forward.1} parent=5 // pred_check_branch
      %212 = sbr.rel (%p209) target = $region12
    $region11: #{gblock_forward.1} parent=5 // pred_region
      %s213 = ssub.s32 %s12, 1
      // Predicated region
      $region13: #{gblock_forward.1} parent=11 // pred_check
        %p214 = pneg %p129
      $region14: #{gblock_forward.1} parent=11 // pred_check_branch
        %216 = sbr.rel (%p214) target = $region16
      $region15: #{gblock_forward.1} parent=11 // pred_region
        _
      $region16: #{gblock_forward.1} parent=11 // pred_fallthru
        _
      // Predicated region
      $region17: #{gblock_forward.1} parent=11 // pred_check
        %p217 = pneg %p150
      $region18: #{gblock_forward.1} parent=11 // pred_check_branch
        %219 = sbr.rel (%p217) target = $region20
      $region19: #{gblock_forward.1} parent=11 // pred_region
        _
      $region20: #{gblock_forward.1} parent=11 // pred_fallthru
        _
      // Predicated region
      $region21: #{gblock_forward.1} parent=11 // pred_check
        %p220 = pneg %p171
      $region22: #{gblock_forward.1} parent=11 // pred_check_branch
        %222 = sbr.rel (%p220) target = $region24
      $region23: #{gblock_forward.1} parent=11 // pred_region
        _
      $region24: #{gblock_forward.1} parent=11 // pred_fallthru
        _
    $region12: #{gblock_forward.1} parent=5 // pred_fallthru
      _
    %p223 = scmp.lt.s32.totalorder %s12, 2
    // Predicated region
    $region25: #{gblock_forward.1} parent=5 // pred_check
      %p224 = pneg %p223
    $region26: #{gblock_forward.1} parent=5 // pred_check_branch
      %226 = sbr.rel (%p224) target = $region28
    $region27: #{gblock_forward.1} parent=5 // pred_region
      // Predicated region
      $region29: #{gblock_forward.1} parent=27 // pred_check
        %p227 = pneg %p46
      $region30: #{gblock_forward.1} parent=27 // pred_check_branch
        %229 = sbr.rel (%p227) target = $region32
      $region31: #{gblock_forward.1} parent=27 // pred_region
        %s230 = smul.u32 2, %s20
        %p231 = scmp.lt.s32.totalorder %s19, 1
        %s232 = scalar_select %p231, %s19, 1
        %p233 = scmp.lt.s32.totalorder %s230, 1
        %s234 = scalar_select %p233, %s230, 1
        %s235 = smul.addr %s232, 2
        %s236 = sadd.s32 %s234, %s235
        %s237 = smul.addr %s236, 4
        %s238 = scalar_lea.vmem %s0, %s237
        %s239 = smul.u32 2, %s20
      $region32: #{gblock_forward.1} parent=27 // pred_fallthru
        _
      // Predicated region
      $region33: #{gblock_forward.1} parent=27 // pred_check
        %p240 = pneg %p74
      $region34: #{gblock_forward.1} parent=27 // pred_check_branch
        %242 = sbr.rel (%p240) target = $region36
      $region35: #{gblock_forward.1} parent=27 // pred_region
        %s243 = smul.u32 2, %s20
        %p244 = scmp.lt.s32.totalorder %s19, 1
        %s245 = scalar_select %p244, %s19, 1
        %p246 = scmp.lt.s32.totalorder %s243, 1
        %s247 = scalar_select %p246, %s243, 1
        %s248 = smul.addr %s245, 2
        %s249 = sadd.s32 %s247, %s248
        %s250 = smul.addr %s249, 4
        %s251 = scalar_lea.vmem %s1, %s250
        %s252 = smul.u32 2, %s20
      $region36: #{gblock_forward.1} parent=27 // pred_fallthru
        _
      // Predicated region
      $region37: #{gblock_forward.1} parent=27 // pred_check
        %p253 = pneg %p102
      $region38: #{gblock_forward.1} parent=27 // pred_check_branch
        %255 = sbr.rel (%p253) target = $region40
      $region39: #{gblock_forward.1} parent=27 // pred_region
        %s256 = smul.u32 2, %s20
        %p257 = scmp.lt.s32.totalorder %s19, 1
        %s258 = scalar_select %p257, %s19, 1
        %p259 = scmp.lt.s32.totalorder %s256, 1
        %s260 = scalar_select %p259, %s256, 1
        %s261 = smul.addr %s258, 2
        %s262 = sadd.s32 %s260, %s261
        %s263 = smul.addr %s262, 8
        %s264 = scalar_lea.vmem %s2, %s263
        %s265 = smul.u32 2, %s20
      $region40: #{gblock_forward.1} parent=27 // pred_fallthru
        _
    $region28: #{gblock_forward.1} parent=5 // pred_fallthru
      _
    %p266 = scmp.le.s32.totalorder 1, %s12
    %p267 = scmp.lt.s32.totalorder %s12, 3
    %p268 = pnand %p266, %p267
    %p269 = pneg %p268
    // Predicated region
    $region41: #{gblock_forward.1} parent=5 // pred_check
      _
    $region42: #{gblock_forward.1} parent=5 // pred_check_branch
      %271 = sbr.rel (%p268) target = $region44
    $region43: #{gblock_forward.1} parent=5 // pred_region
      %s272 = ssub.s32 %s12, 1
      %s273 = smul.u32 2, %s22
      %p274 = scmp.lt.s32.totalorder %s21, 1
      %s275 = scalar_select %p274, %s21, 1
      %p276 = scmp.lt.s32.totalorder %s273, 1
      %s277 = scalar_select %p276, %s273, 1
      %s278 = smul.addr %s275, 2
      %s279 = sadd.s32 %s277, %s278
      %s280 = smul.addr %s279, 4
      %s281 = scalar_lea.vmem %s0, %s280
      %p282 = pneg %p52
      %p283 = pneg %p49
      %s284 = smul.u32 2, %s22
      %p285 = scmp.lt.s32.totalorder %s21, 1
      %s286 = scalar_select %p285, %s21, 1
      %p287 = scmp.lt.s32.totalorder %s284, 1
      %s288 = scalar_select %p287, %s284, 1
      %s289 = smul.addr %s286, 2
      %s290 = sadd.s32 %s288, %s289
      %s291 = smul.addr %s290, 4
      %s292 = scalar_lea.vmem %s1, %s291
      %p293 = pneg %p80
      %p294 = pneg %p77
      %s295 = smul.u32 2, %s22
      %p296 = scmp.lt.s32.totalorder %s21, 1
      %s297 = scalar_select %p296, %s21, 1
      %p298 = scmp.lt.s32.totalorder %s295, 1
      %s299 = scalar_select %p298, %s295, 1
      %s300 = smul.addr %s297, 2
      %s301 = sadd.s32 %s299, %s300
      %s302 = smul.addr %s301, 8
      %s303 = scalar_lea.vmem %s2, %s302
      %p304 = pneg %p108
      %p305 = pneg %p105
      %p306 = pneg %p129
      %p307 = pneg %p126
      %p308 = pneg %p150
      %p309 = pneg %p147
      %p310 = pneg %p171
      %p311 = pneg %p168
      %p312 = pneg %p199
      %p313 = pneg %p196
      %s314 = smul.u32 2, %s22
      %p315 = scmp.lt.s32.totalorder %s21, 1
      %s316 = scalar_select %p315, %s21, 1
      %p317 = scmp.lt.s32.totalorder %s314, 1
      %s318 = scalar_select %p317, %s314, 1
      %s319 = smul.addr %s316, 2
      %s320 = sadd.s32 %s318, %s319
      %s321 = smul.addr %s320, 8
      %s322 = scalar_lea.vmem %s6, %s321
      %s323 = smul.u32 2, %s22
      %p324 = scmp.lt.s32.totalorder %s21, 1
      %s325 = scalar_select %p324, %s21, 1
      %p326 = scmp.lt.s32.totalorder %s323, 1
      %s327 = scalar_select %p326, %s323, 1
      %s328 = smul.addr %s325, 2
      %s329 = sadd.s32 %s327, %s328
      %s330 = smul.addr %s329, 4
      %s331 = scalar_lea.vmem %s0, %s330
      %s332 = smul.u32 2, %s22
      %s333 = smul.u32 2, %s22
      %p334 = scmp.lt.s32.totalorder %s21, 1
      %s335 = scalar_select %p334, %s21, 1
      %p336 = scmp.lt.s32.totalorder %s333, 1
      %s337 = scalar_select %p336, %s333, 1
      %s338 = smul.addr %s335, 2
      %s339 = sadd.s32 %s337, %s338
      %s340 = smul.addr %s339, 4
      %s341 = scalar_lea.vmem %s1, %s340
      %s342 = smul.u32 2, %s22
      %s343 = smul.u32 2, %s22
      %p344 = scmp.lt.s32.totalorder %s21, 1
      %s345 = scalar_select %p344, %s21, 1
      %p346 = scmp.lt.s32.totalorder %s343, 1
      %s347 = scalar_select %p346, %s343, 1
      %s348 = smul.addr %s345, 2
      %s349 = sadd.s32 %s347, %s348
      %s350 = smul.addr %s349, 8
      %s351 = scalar_lea.vmem %s2, %s350
      %s352 = smul.u32 2, %s22
      %s353 = smul.u32 2, %s22
      %p354 = scmp.lt.s32.totalorder %s21, 1
      %s355 = scalar_select %p354, %s21, 1
      %p356 = scmp.lt.s32.totalorder %s353, 1
      %s357 = scalar_select %p356, %s353, 1
      %s358 = smul.addr %s355, 2
      %s359 = sadd.s32 %s357, %s358
      %s360 = smul.addr %s359, 8
      %s361 = scalar_lea.vmem %s6, %s360
      %s362 = smul.u32 2, %s22
      %v363 = vld [vmem:[%s3] sm:$0xff]
      %v364 = vld [vmem:[%s331] sm:$0xff]
      %v365 = vld [vmem:[%s4] sm:$0xff]
      %v366 = vld [vmem:[%s341] sm:$0xff]
      %v368 = vcombine.high %v366, %v366
      %vm369 = vcmask 31744
      %v371 = vsel %vm369, %v365, 0
      %vm373 = vcmask 1043456
      %v374 = vsel %vm373, %v366, 0
      %v376 = vsel %vm373, %v368, 0
      %378 = vmatprep.subr.mxu0 %v376
      %379 = vmatpush1.msra.mxu0 %v374
      %380 = vmatprep.subr.mxu0 0.0
      %381 = vmatpush1.msra.mxu0 0.0
      %382 = vmatprep.subr.mxu0 0.0
      %383 = vmatpush1.msra.mxu0 0.0
      %384 = vmatprep.subr.mxu0 0.0
      %385 = vmatpush1.msra.mxu0 0.0
      %386 = vmatprep.subr.mxu0 0.0
      %387 = vmatpush1.msra.mxu0 0.0
      %388 = vmatprep.subr.mxu0 0.0
      %389 = vmatpush1.msra.mxu0 0.0
      %390 = vmatprep.subr.mxu0 0.0
      %391 = vmatpush1.msra.mxu0 0.0
      %392 = vmatprep.subr.mxu0 0.0
      %393 = vmatpush1.msra.mxu0 0.0
      %394 = vmatprep.subr.mxu0 0.0
      %395 = vmatpush1.msra.mxu0 0.0
      %396 = vmatprep.subr.mxu0 0.0
      %397 = vmatpush1.msra.mxu0 0.0
      %398 = vmatprep.subr.mxu0 0.0
      %399 = vmatpush1.msra.mxu0 0.0
      %400 = vmatprep.subr.mxu0 0.0
      %401 = vmatpush1.msra.mxu0 0.0
      %402 = vmatprep.subr.mxu0 0.0
      %403 = vmatpush1.msra.mxu0 0.0
      %404 = vmatprep.subr.mxu0 0.0
      %405 = vmatpush1.msra.mxu0 0.0
      %406 = vmatprep.subr.mxu0 0.0
      %407 = vmatpush1.msra.mxu0 0.0
      %408 = vmatprep.subr.mxu0 0.0
      %409 = vmatpush1.msra.mxu0 0.0
      %410 = vmatprep.subr.mxu0 0.0
      %411 = vmatpush1.msra.mxu0 0.0
      %412 = vmatprep.subr.mxu0 0.0
      %413 = vmatpush1.msra.mxu0 0.0
      %414 = vmatprep.subr.mxu0 0.0
      %415 = vmatpush1.msra.mxu0 0.0
      %416 = vmatprep.subr.mxu0 0.0
      %417 = vmatpush1.msra.mxu0 0.0
      %418 = vmatprep.subr.mxu0 0.0
      %419 = vmatpush1.msra.mxu0 0.0
      %420 = vmatprep.subr.mxu0 0.0
      %421 = vmatpush1.msra.mxu0 0.0
      %422 = vmatprep.subr.mxu0 0.0
      %423 = vmatpush1.msra.mxu0 0.0
      %424 = vmatprep.subr.mxu0 0.0
      %425 = vmatpush1.msra.mxu0 0.0
      %426 = vmatprep.subr.mxu0 0.0
      %427 = vmatpush1.msra.mxu0 0.0
      %428 = vmatprep.subr.mxu0 0.0
      %429 = vmatpush1.msra.mxu0 0.0
      %430 = vmatprep.subr.mxu0 0.0
      %431 = vmatpush1.msra.mxu0 0.0
      %432 = vmatprep.subr.mxu0 0.0
      %433 = vmatpush1.msra.mxu0 0.0
      %434 = vmatprep.subr.mxu0 0.0
      %435 = vmatpush1.msra.mxu0 0.0
      %436 = vmatprep.subr.mxu0 0.0
      %437 = vmatpush1.msra.mxu0 0.0
      %438 = vmatprep.subr.mxu0 0.0
      %439 = vmatpush1.msra.mxu0 0.0
      %440 = vmatprep.subr.mxu0 0.0
      %441 = vmatpush1.msra.mxu0 0.0
      %442 = vmatprep.mubr.f32.mxu0 0.0
      %443 = vmatmul.mubr.f32.gmra.mrb[0].mxu0 %v371
      %v444 = vpop.f32.mrb[0].mxu0
      %v445 = vadd.f32 0.0, %v444
      %v446 = vpop.f32.mrb[0].mxu0
      %v447 = vadd.f32 0.0, %v446
      %448 = vdwg.mxu0
      %v450 = vcombine.high %v364, %v364
      %v452 = vsel %vm369, %v363, 0
      %v454 = vsel %vm373, %v364, 0
      %v456 = vsel %vm373, %v450, 0
      %458 = vmatprep.subr.mxu0 %v456
      %459 = vmatpush1.msra.mxu0 %v454
      %460 = vmatprep.subr.mxu0 0.0
      %461 = vmatpush1.msra.mxu0 0.0
      %462 = vmatprep.subr.mxu0 0.0
      %463 = vmatpush1.msra.mxu0 0.0
      %464 = vmatprep.subr.mxu0 0.0
      %465 = vmatpush1.msra.mxu0 0.0
      %466 = vmatprep.subr.mxu0 0.0
      %467 = vmatpush1.msra.mxu0 0.0
      %468 = vmatprep.subr.mxu0 0.0
      %469 = vmatpush1.msra.mxu0 0.0
      %470 = vmatprep.subr.mxu0 0.0
      %471 = vmatpush1.msra.mxu0 0.0
      %472 = vmatprep.subr.mxu0 0.0
      %473 = vmatpush1.msra.mxu0 0.0
      %474 = vmatprep.subr.mxu0 0.0
      %475 = vmatpush1.msra.mxu0 0.0
      %476 = vmatprep.subr.mxu0 0.0
      %477 = vmatpush1.msra.mxu0 0.0
      %478 = vmatprep.subr.mxu0 0.0
      %479 = vmatpush1.msra.mxu0 0.0
      %480 = vmatprep.subr.mxu0 0.0
      %481 = vmatpush1.msra.mxu0 0.0
      %482 = vmatprep.subr.mxu0 0.0
      %483 = vmatpush1.msra.mxu0 0.0
      %484 = vmatprep.subr.mxu0 0.0
      %485 = vmatpush1.msra.mxu0 0.0
      %486 = vmatprep.subr.mxu0 0.0
      %487 = vmatpush1.msra.mxu0 0.0
      %488 = vmatprep.subr.mxu0 0.0
      %489 = vmatpush1.msra.mxu0 0.0
      %490 = vmatprep.subr.mxu0 0.0
      %491 = vmatpush1.msra.mxu0 0.0
      %492 = vmatprep.subr.mxu0 0.0
      %493 = vmatpush1.msra.mxu0 0.0
      %494 = vmatprep.subr.mxu0 0.0
      %495 = vmatpush1.msra.mxu0 0.0
      %496 = vmatprep.subr.mxu0 0.0
      %497 = vmatpush1.msra.mxu0 0.0
      %498 = vmatprep.subr.mxu0 0.0
      %499 = vmatpush1.msra.mxu0 0.0
      %500 = vmatprep.subr.mxu0 0.0
      %501 = vmatpush1.msra.mxu0 0.0
      %502 = vmatprep.subr.mxu0 0.0
      %503 = vmatpush1.msra.mxu0 0.0
      %504 = vmatprep.subr.mxu0 0.0
      %505 = vmatpush1.msra.mxu0 0.0
      %506 = vmatprep.subr.mxu0 0.0
      %507 = vmatpush1.msra.mxu0 0.0
      %508 = vmatprep.subr.mxu0 0.0
      %509 = vmatpush1.msra.mxu0 0.0
      %510 = vmatprep.subr.mxu0 0.0
      %511 = vmatpush1.msra.mxu0 0.0
      %512 = vmatprep.subr.mxu0 0.0
      %513 = vmatpush1.msra.mxu0 0.0
      %514 = vmatprep.subr.mxu0 0.0
      %515 = vmatpush1.msra.mxu0 0.0
      %516 = vmatprep.subr.mxu0 0.0
      %517 = vmatpush1.msra.mxu0 0.0
      %518 = vmatprep.subr.mxu0 0.0
      %519 = vmatpush1.msra.mxu0 0.0
      %520 = vmatprep.subr.mxu0 0.0
      %521 = vmatpush1.msra.mxu0 0.0
      %522 = vmatprep.mubr.f32.mxu0 0.0
      %523 = vmatmul.mubr.f32.gmra.mrb[0].mxu0 %v452
      %v524 = vpop.f32.mrb[0].mxu0
      %v525 = vadd.f32 %v445, %v524
      %v526 = vpop.f32.mrb[0].mxu0
      %v527 = vadd.f32 %v447, %v526
      %528 = vdwg.mxu0
      %v529 = vld [vmem:[%s5] sm:$0xff]
      %531 = vset.pattern.permute.xlu0 0
      %532 = vperm.xlu0 %531, %v529
      %v533 = vpop.permute.xlu0 %532
      %v535 = vadd.f32 %v525, %v533
      %v536 = vadd.f32 %v527, %v533
      %v537 = vxor.u32 %v535, 2147483648
      %v538 = vxor.u32 %v536, 2147483648
      %v539 = vmul.f32 %v537, 1.442695
      %v540 = vpow.pop %v539
      %v541 = vmul.f32 %v538, 1.442695
      %v542 = vpow.pop %v541
      %v543 = vadd.f32 %v540, 1.0
      %v544 = vadd.f32 %v542, 1.0
      %v545 = vrcp.pop %v543
      %v546 = vmul.f32 1.0, %v545
      %v547 = vrcp.pop %v544
      %v548 = vmul.f32 1.0, %v547
      %v549 = vld [vmem:[%s351] sm:$0xff]
      %v550 = vld [vmem:[%s351 + $0x8] sm:$0xff]
      %v551 = vmul.f32 %v546, %v549
      %v552 = vmul.f32 %v548, %v550
      %553 = vst [vmem:[%s361] sm:$0xff] %v551
      %554 = vst [vmem:[%s361 + $0x8] sm:$0xff] %v552
      %s555 = smul.u32 2, %s22
      %p556 = scmp.lt.s32.totalorder %s21, 1
      %s557 = scalar_select %p556, %s21, 1
      %p558 = scmp.lt.s32.totalorder %s555, 1
      %s559 = scalar_select %p558, %s555, 1
      %s560 = smul.addr %s557, 2
      %s561 = sadd.s32 %s559, %s560
      %s562 = smul.addr %s561, 8
      %s563 = scalar_lea.vmem %s6, %s562
      // Predicated region
      $region45: #{gblock_forward.1} parent=43 // pred_check
        %p564 = pneg %p196
      $region46: #{gblock_forward.1} parent=43 // pred_check_branch
        %566 = sbr.rel (%p564) target = $region48
      $region47: #{gblock_forward.1} parent=43 // pred_region
        %s567 = smul.u32 2, %s22
      $region48: #{gblock_forward.1} parent=43 // pred_fallthru
        _
    $region44: #{gblock_forward.1} parent=5 // pred_fallthru
      _
    %p568 = scmp.le.s32.totalorder 2, %s12
    // Predicated region
    $region49: #{gblock_forward.1} parent=5 // pred_check
      %p569 = pneg %p568
    $region50: #{gblock_forward.1} parent=5 // pred_check_branch
      %571 = sbr.rel (%p569) target = $region52
    $region51: #{gblock_forward.1} parent=5 // pred_region
      %s572 = ssub.s32 %s12, 2
      // Predicated region
      $region53: #{gblock_forward.1} parent=51 // pred_check
        %p573 = pneg %p202
      $region54: #{gblock_forward.1} parent=51 // pred_check_branch
        %575 = sbr.rel (%p573) target = $region56
      $region55: #{gblock_forward.1} parent=51 // pred_region
        %s576 = smul.u32 2, %s24
        %p577 = scmp.lt.s32.totalorder %s23, 1
        %s578 = scalar_select %p577, %s23, 1
        %p579 = scmp.lt.s32.totalorder %s576, 1
        %s580 = scalar_select %p579, %s576, 1
        %s581 = smul.addr %s578, 2
        %s582 = sadd.s32 %s580, %s581
        %s583 = smul.addr %s582, 8
        %s584 = scalar_lea.vmem %s6, %s583
      $region56: #{gblock_forward.1} parent=51 // pred_fallthru
        _
    $region52: #{gblock_forward.1} parent=5 // pred_fallthru
      _
  $region6: #{gblock_forward.1} parent=0 // loop_footer
    %s16 = sadd.s32 1, %s12
  $region7: #{gblock_forward.1} parent=0 // loop_footer_branch
    %11 = sbr.rel target = $region3
  $region8: #{gblock_forward.1} parent=0 // loop_exit
    _

</llo_original>
